<compile_context>
chip_gen: v6e
topology: v6e:2x2x1
jax: 0.10.0
libtpu: 0.0.40
codegen_flags: <defaults>
</compile_context>

<pallas_src>
import jax
import jax.numpy as jnp
from jax import lax
from jax.experimental import pallas as pl
from jax.experimental.pallas import tpu as pltpu


def _round_up(x, m):
    return (x + m - 1) // m * m


def _i32(x):
    """uint32 constant -> int32 scalar with the same bit pattern (wrapping)."""
    x &= 0xFFFFFFFF
    if x >= 1 << 31:
        x -= 1 << 32
    return jnp.int32(x)


def _fmix32(x):
    """murmur3 32-bit finalizer on (wrapping) int32 values; full avalanche."""
    x = x ^ lax.shift_right_logical(x, jnp.int32(16))
    x = x * _i32(0x85EBCA6B)
    x = x ^ lax.shift_right_logical(x, jnp.int32(13))
    x = x * _i32(0xC2B2AE35)
    x = x ^ lax.shift_right_logical(x, jnp.int32(16))
    return x


def make_prenet_kernel(num_layers, keep_prob, compute_dtype):
    """Fused (bias-free matmul -> ReLU -> dropout) x num_layers.

    The 1/keep rescale of layers 0..L-2 is folded into the prepared weights of
    the following layer (see prepare_prenet_weights); only the final layer's
    rescale is applied here, fused into the output store.
    """
    drop = keep_prob < 1.0
    inv_keep = (1.0 / keep_prob) if drop else 1.0
    # Keep an element iff the low 24 hashed bits < keep_prob * 2**24
    # (bias < 6e-8 at p=0.5; exact enough for dropout).
    threshold = int(round(keep_prob * (1 << 24)))

    def kernel(seed_ref, x_ref, *refs):
        w_refs = refs[:num_layers]
        o_ref = refs[num_layers]
        tm = o_ref.shape[0]

        if drop:
            seed_mix = seed_ref[0] * _i32(0x27220A95)
            row_base = pl.program_id(0) * tm

        h = x_ref[...].astype(compute_dtype)
        for l in range(num_layers):
            # Bias-free Linear on the MXU, f32 accumulation.
            acc = jnp.dot(h, w_refs[l][...], preferred_element_type=jnp.float32)
            # bf16 epilogue: ReLU + mask at half VPU cost on v6e/v7x.
            h = jnp.maximum(acc.astype(compute_dtype), 0.0)
            if drop:
                rows = lax.broadcasted_iota(jnp.int32, h.shape, 0) + row_base
                cols = lax.broadcasted_iota(jnp.int32, h.shape, 1)
                mixed = (rows * _i32(0x9E3779B1)
                         + cols * _i32(0x85EBCA77)
                         + seed_mix
                         + _i32(0x7FEB352D * (l + 1)))
                bits = _fmix32(mixed)
                keep = (bits & jnp.int32(0x00FFFFFF)) < jnp.int32(threshold)
                h = jnp.where(keep, h, 0.0)
        if drop:
            h = h * inv_keep          # last layer's 1/keep (others folded in weights)
        o_ref[...] = h.astype(o_ref.dtype)

    return kernel


def init_torch_weights(key, in_dim, sizes):
    """PyTorch LinearNorm layout: weight[l] is [out, in], xavier-uniform, no bias."""
    in_sizes = [in_dim] + list(sizes[:-1])
    keys = jax.random.split(key, len(sizes))
    ws = []
    for k, (i, o) in zip(keys, zip(in_sizes, sizes)):
        gain = float(jnp.sqrt(6.0 / (i + o)))
        ws.append(jax.random.uniform(k, (o, i), jnp.float32, -gain, gain))
    return ws


def prepare_prenet_weights(torch_weights, compute_dtype=jnp.bfloat16, dropout_p=0.5):
    """ONE-TIME glue (off the per-call path):
      * transpose to [in, out]
      * zero-pad every OUTPUT feature dim to a multiple of 128 (lane-dense MXU
        operands + unmasked output stores); layer-0 input dim stays unpadded so
        raw x can be fed without a per-call pad
      * fold the previous layer's dropout 1/keep rescale into layers 1..L-1
      * cast to bf16 (fast MXU path, half the weight DMA bytes)
    Weights prepared with a given dropout_p must be used with that same
    dropout_p in prenet_forward.
    """
    keep = 1.0 - dropout_p
    inv_keep = (1.0 / keep) if dropout_p > 0.0 else 1.0
    prepared = []
    for l, w in enumerate(torch_weights):
        out_f, in_f = w.shape
        out_p = _round_up(out_f, 128)
        in_p = in_f if l == 0 else _round_up(in_f, 128)
        scale = inv_keep if l >= 1 else 1.0
        wt = (jnp.asarray(w, jnp.float32).T * scale).astype(compute_dtype)
        wp = jnp.zeros((in_p, out_p), compute_dtype).at[:in_f, :out_f].set(wt)
        prepared.append(wp)
    return prepared


def prenet_forward(x, weights, out_dim, *, dropout_p=0.5, seed=0,
                   tile_m=512, compute_dtype=jnp.bfloat16, out_dtype=jnp.bfloat16):
    """x: [..., in_dim]; weights: output of prepare_prenet_weights(..., dropout_p)."""
    orig_shape = x.shape
    in_f = orig_shape[-1]
    n = 1
    for d in orig_shape[:-1]:
        n *= d

    num_layers = len(weights)
    assert weights[0].shape[0] == in_f, "weights prepared for a different in_dim"
    d_last = weights[-1].shape[1]
    assert d_last >= out_dim

    # Row tiling: one big tile whenever it fits (no grid-step / pad overhead on
    # single-TC chips and latency-bound decode shapes); otherwise balanced
    # 16-aligned tiles sharded across v7x's TensorCores via the parallel grid.
    if n <= tile_m:
        tm, n_pad = n, n
    else:
        n_tiles_target = -(-n // tile_m)
        tm = _round_up(-(-n // n_tiles_target), 16)
        n_pad = _round_up(n, tm)
    n_tiles = n_pad // tm

    x2 = x.reshape(n, in_f).astype(compute_dtype)
    if n_pad > n:
        x2 = jnp.pad(x2, ((0, n_pad - n), (0, 0)))

    kernel = make_prenet_kernel(num_layers, 1.0 - dropout_p, compute_dtype)

    in_specs = [pl.BlockSpec((tm, in_f), lambda i, *_: (i, 0))]          # x tile
    for w in weights:                                                     # resident W_l
        # NOTE: grid-invariant; could be pl.Buffered(1) on v7x if widths/tile_m grow.
        in_specs.append(pl.BlockSpec(w.shape, lambda i, *_: (0, 0)))
    out_specs = pl.BlockSpec((tm, d_last), lambda i, *_: (i, 0))

    flops = 2 * n_pad * sum(int(w.shape[0]) * int(w.shape[1]) for w in weights)
    bytes_accessed = (int(x2.size) * x2.dtype.itemsize
                      + sum(int(w.size) * w.dtype.itemsize for w in weights)
                      + n_pad * d_last * jnp.dtype(out_dtype).itemsize)
    cost = pl.CostEstimate(flops=int(flops), transcendentals=0,
                           bytes_accessed=int(bytes_accessed))

    seed_arr = jnp.asarray([seed], dtype=jnp.int32)

    out_pad = pl.pallas_call(
        kernel,
        out_shape=jax.ShapeDtypeStruct((n_pad, d_last), out_dtype),
        grid_spec=pltpu.PrefetchScalarGridSpec(
            num_scalar_prefetch=1,
            grid=(n_tiles,),
            in_specs=in_specs,
            out_specs=out_specs,
        ),
        compiler_params=pltpu.CompilerParams(
            dimension_semantics=("parallel",),
            vmem_limit_bytes=32 * 1024 * 1024,   # safe on v5e/v6e/v7x; tiles are tiny
        ),
        cost_estimate=cost,
    )(seed_arr, x2, *weights)

    out = out_pad
    if n_pad > n:
        out = out[:n]
    if d_last > out_dim:
        out = out[:, :out_dim]
    return out.reshape(orig_shape[:-1] + (out_dim,))


def reference_forward(x, torch_weights, compute_dtype=jnp.bfloat16, out_dtype=jnp.bfloat16):
    """Pure-JAX mirror of the kernel math with dropout DISABLED (numeric check):
    relu(x @ W.T) chained, bf16 MXU operands, f32 accumulation, bf16 epilogue."""
    orig = x.shape
    h = x.reshape(-1, orig[-1]).astype(compute_dtype)
    for w in torch_weights:
        acc = jnp.dot(h, jnp.asarray(w, jnp.float32).T.astype(compute_dtype),
                      preferred_element_type=jnp.float32)
        h = jnp.maximum(acc.astype(compute_dtype), 0.0)
    out_dim = torch_weights[-1].shape[0]
    return h.astype(out_dtype).reshape(orig[:-1] + (out_dim,))


if __name__ == "__main__":
    key = jax.random.PRNGKey(0)
    kx, kw = jax.random.split(key)

    # Small Tacotron-style shapes: x is [B, T, n_mel], prenet sizes [256, 256].
    B, T, in_dim = 4, 16, 80
    sizes = [256, 256]

    x = jax.random.normal(kx, (B, T, in_dim), jnp.float32)
    torch_ws = init_torch_weights(kw, in_dim, sizes)

    # 1) Deterministic path (dropout off) cross-checked against pure-JAX reference.
    w_nodrop = prepare_prenet_weights(torch_ws, dropout_p=0.0)
    out_det = jax.block_until_ready(
        prenet_forward(x, w_nodrop, sizes[-1], dropout_p=0.0))
    ref = reference_forward(x, torch_ws)
    assert out_det.shape == (B, T, sizes[-1])
    assert jnp.allclose(out_det.astype(jnp.float32), ref.astype(jnp.float32),
                        atol=3e-2, rtol=3e-2), "mismatch vs reference"

    # 2) Real Prenet forward: ReLU + dropout(p=0.5), always active (training=True).
    w_drop = prepare_prenet_weights(torch_ws, dropout_p=0.5)
    out = jax.block_until_ready(
        prenet_forward(x, w_drop, sizes[-1], dropout_p=0.5, seed=1234))
    assert out.shape == (B, T, sizes[-1])
    assert bool(jnp.all(jnp.isfinite(out.astype(jnp.float32))))
    assert bool(jnp.all(out >= 0))                       # relu * nonnegative scale
    zero_frac = float(jnp.mean((out == 0).astype(jnp.float32)))
    assert zero_frac > 0.5, f"dropout appears inactive (zero_frac={zero_frac})"

    # Different seeds give different dropout masks.
    out2 = jax.block_until_ready(
        prenet_forward(x, w_drop, sizes[-1], dropout_p=0.5, seed=4321))
    assert not bool(jnp.array_equal(out, out2)), "dropout mask should depend on seed"

    print("KERNEL_OK")
</pallas_src>

<mosaic_0001>
module attributes {stable_mosaic.version = 11 : i64} {
  func.func @kernel(%arg0: i32, %arg1: memref<1xi32, #tpu.memory_space<smem>>, %arg2: memref<64x80xbf16, #tpu.memory_space<vmem>>, %arg3: memref<80x256xbf16, #tpu.memory_space<vmem>>, %arg4: memref<256x256xbf16, #tpu.memory_space<vmem>>, %arg5: memref<64x256xbf16, #tpu.memory_space<vmem>>) attributes {dimension_semantics = [#tpu.dimension_semantics<parallel>], iteration_bounds = array<i64: 1>, scalar_prefetch = 1 : i64, scratch_operands = 0 : i64, tpu.core_type = #tpu.core_type<tc>, window_params = [{transform_indices = @transform_0, window_bounds = array<i64: 64, 80>}, {pipeline_mode = #tpu.pipeline_mode<synchronous>, transform_indices = @transform_1, window_bounds = array<i64: 80, 256>}, {pipeline_mode = #tpu.pipeline_mode<synchronous>, transform_indices = @transform_2, window_bounds = array<i64: 256, 256>}, {transform_indices = @transform_3, window_bounds = array<i64: 64, 256>}]} {
    %c0 = arith.constant 0 : index
    %c0_0 = arith.constant 0 : index
    %0 = vector.load %arg2[%c0, %c0_0] : memref<64x80xbf16, #tpu.memory_space<vmem>>, vector<64x80xbf16>
    %c0_1 = arith.constant 0 : index
    %c0_2 = arith.constant 0 : index
    %1 = vector.load %arg3[%c0_1, %c0_2] : memref<80x256xbf16, #tpu.memory_space<vmem>>, vector<80x256xbf16>
    %cst = arith.constant dense<0.000000e+00> : vector<64x256xf32>
    %2 = tpu.matmul %0, %1, %cst {dimension_numbers = #tpu.dot_dimension_numbers<[1], [0], [0], [1], [0, 0, 1, 1], [], []>} : vector<64x80xbf16>, vector<80x256xbf16>, vector<64x256xf32> -> vector<64x256xf32>
    %3 = arith.truncf %2 : vector<64x256xf32> to vector<64x256xbf16>
    %cst_3 = arith.constant 0.000000e+00 : bf16
    %4 = vector.broadcast %cst_3 : bf16 to vector<64x256xbf16>
    %5 = arith.maximumf %3, %4 : vector<64x256xbf16>
    %c0_4 = arith.constant 0 : index
    %c0_5 = arith.constant 0 : index
    %6 = vector.load %arg4[%c0_4, %c0_5] : memref<256x256xbf16, #tpu.memory_space<vmem>>, vector<256x256xbf16>
    %cst_6 = arith.constant dense<0.000000e+00> : vector<64x256xf32>
    %7 = tpu.matmul %5, %6, %cst_6 {dimension_numbers = #tpu.dot_dimension_numbers<[1], [0], [0], [1], [0, 0, 1, 1], [], []>} : vector<64x256xbf16>, vector<256x256xbf16>, vector<64x256xf32> -> vector<64x256xf32>
    %8 = arith.truncf %7 : vector<64x256xf32> to vector<64x256xbf16>
    %cst_7 = arith.constant 0.000000e+00 : bf16
    %9 = vector.broadcast %cst_7 : bf16 to vector<64x256xbf16>
    %10 = arith.maximumf %8, %9 : vector<64x256xbf16>
    %c0_8 = arith.constant 0 : index
    %c0_9 = arith.constant 0 : index
    %11 = vector.load %arg5[%c0_8, %c0_9] : memref<64x256xbf16, #tpu.memory_space<vmem>>, vector<64x256xbf16>
    tpu.vector_store %arg5[%c0_8, %c0_9], %10 {strides = array<i32>} : memref<64x256xbf16, #tpu.memory_space<vmem>>, vector<64x256xbf16>,
    return
  }
  func.func @transform_0(%arg0: i32, %arg1: memref<1xi32, #tpu.memory_space<smem>>) -> (i32, i32) {
    %c0_i32 = arith.constant 0 : i32
    %c0_i32_0 = arith.constant 0 : i32
    return %arg0, %c0_i32 : i32, i32
  }
  func.func @transform_1(%arg0: i32, %arg1: memref<1xi32, #tpu.memory_space<smem>>) -> (i32, i32) {
    %c0_i32 = arith.constant 0 : i32
    %c0_i32_0 = arith.constant 0 : i32
    %c0_i32_1 = arith.constant 0 : i32
    return %c0_i32, %c0_i32_0 : i32, i32
  }
  func.func @transform_2(%arg0: i32, %arg1: memref<1xi32, #tpu.memory_space<smem>>) -> (i32, i32) {
    %c0_i32 = arith.constant 0 : i32
    %c0_i32_0 = arith.constant 0 : i32
    %c0_i32_1 = arith.constant 0 : i32
    return %c0_i32, %c0_i32_0 : i32, i32
  }
  func.func @transform_3(%arg0: i32, %arg1: memref<1xi32, #tpu.memory_space<smem>>) -> (i32, i32) {
    %c0_i32 = arith.constant 0 : i32
    %c0_i32_0 = arith.constant 0 : i32
    return %arg0, %c0_i32 : i32, i32
  }
}

</mosaic_0001>

<llo_original>
// kernel: tpu_custom_call.1
$region0: #{tpu_custom_call.1}
  #allocation0 [shape = 'u32[]', space=smem, size = 0x4, offset = 0x4, fixed_abs, tag = 'smem constant byte address 0x4 - core index']
  #allocation1 [shape = 'u32[144,128]{1,0:T(1,128)}', space=vmem, size = 0x12000, scoped, tag = 'internal scratch']
  #allocation2 [shape = 's32[1]{0}', space=sflag, size = 0x4, scoped, tag = 'scoped memory for tpu_custom_call.1']
  #allocation3 [shape = 's32[1]{0:T(128)S(6)}', space=smem, size = 0x200, scoped, tag = 'prefetched SMEM operand 0']
  %s0 = inlined_call_operand.<no memory space> [shape: s32[1], index: 0, kind: input, shape index: {}]
  %s1 = inlined_call_operand.hbm [shape: bf16[64,80], index: 1, kind: input, shape index: {}]
  %s2 = inlined_call_operand.hbm [shape: bf16[80,256], index: 2, kind: input, shape index: {}]
  %s3 = inlined_call_operand.hbm [shape: bf16[256,256], index: 3, kind: input, shape index: {}]
  %s4 = inlined_call_operand.hbm [shape: bf16[64,256], index: 4, kind: output, shape index: {}]
  %s5 = sld [smem:[#allocation0]]
  $region34: #{tpu_custom_call.1} parent=0
    _
  %s7 = ssub.s32 1, %s5
  %s8 = scalar_select 0, %s7, %s5
  %9 = sst [smem:[#allocation3]] %s0
  $region1: #{tpu_custom_call.1} parent=0
    #allocation4 [shape = 'u8[16384]{0}', space=vmem, size = 0x4000, scoped, tag = 'input window, operand 1, single buffered']
    #allocation5 [shape = 's32[1]{0}', space=sflag, size = 0x4, scoped, tag = 'scoped memory for tpu_custom_call.1']
    #allocation6 [shape = 's32[1]{0}', space=sflag, size = 0x4, scoped, tag = 'scoped memory for tpu_custom_call.1']
    #allocation7 [shape = 'u8[40960]{0}', space=vmem, size = 0xa000, scoped, tag = 'input window, operand 2, single buffered']
    #allocation8 [shape = 's32[1]{0}', space=sflag, size = 0x4, scoped, tag = 'scoped memory for tpu_custom_call.1']
    #allocation9 [shape = 'u8[131072]{0}', space=vmem, size = 0x20000, scoped, tag = 'input window, operand 3, single buffered']
    #allocation10 [shape = 'u8[32768]{0}', space=vmem, size = 0x8000, scoped, tag = 'output window, operand 0, single buffered']
    %10 = vsyncpa [#allocation5], 0
    %11 = vsyncpa [#allocation8], 0
    %12 = vsyncpa [#allocation6], 0
    // Predicated region
    $region2: #{tpu_custom_call.1} parent=1 // pred_check
      _
    $region3: #{tpu_custom_call.1} parent=1 // pred_check_branch
      %14 = sbr.rel (0) target = $region5
    $region4: #{tpu_custom_call.1} parent=1 // pred_region
      %s16 = ssub.s32 512, 512
      %17 = vsyncadd [#allocation5], %s16
      %s18 = sshll.u32 [#allocation4], 4
      %s19 = int_to_ptr.vmem [resolvable:$true] %s18
      %24 = dma.hbm_to_vmem [thread:$0]  %s1, 512, %s19, [#allocation5], 64, 64, 4
    $region5: #{tpu_custom_call.1} parent=1 // pred_fallthru
      _
    // Predicated region
    $region6: #{tpu_custom_call.1} parent=1 // pred_check
      _
    $region7: #{tpu_custom_call.1} parent=1 // pred_check_branch
      %26 = sbr.rel (0) target = $region9
    $region8: #{tpu_custom_call.1} parent=1 // pred_region
      %s28 = ssub.s32 1280, 1280
      %29 = vsyncadd [#allocation8], %s28
      %s30 = sshll.u32 [#allocation7], 4
      %s31 = int_to_ptr.vmem [resolvable:$true] %s30
      %36 = dma.hbm_to_vmem [thread:$0]  %s2, 1280, %s31, [#allocation8], 128, 128, 8
    $region9: #{tpu_custom_call.1} parent=1 // pred_fallthru
      _
    // Predicated region
    $region10: #{tpu_custom_call.1} parent=1 // pred_check
      _
    $region11: #{tpu_custom_call.1} parent=1 // pred_check_branch
      %38 = sbr.rel (0) target = $region13
    $region12: #{tpu_custom_call.1} parent=1 // pred_region
      %s40 = ssub.s32 4096, 4096
      %41 = vsyncadd [#allocation8], %s40
      %s42 = sshll.u32 [#allocation9], 4
      %s43 = int_to_ptr.vmem [resolvable:$true] %s42
      %48 = dma.hbm_to_vmem [thread:$0]  %s3, 4096, %s43, [#allocation8], 128, 128, 8
    $region13: #{tpu_custom_call.1} parent=1 // pred_fallthru
      _
    // Predicated region
    $region14: #{tpu_custom_call.1} parent=1 // pred_check
      _
    $region15: #{tpu_custom_call.1} parent=1 // pred_check_branch
      %50 = sbr.rel (0) target = $region17
    $region16: #{tpu_custom_call.1} parent=1 // pred_region
      %51 = dma.done [#allocation5], 512
    $region17: #{tpu_custom_call.1} parent=1 // pred_fallthru
      _
    // Predicated region
    $region18: #{tpu_custom_call.1} parent=1 // pred_check
      _
    $region19: #{tpu_custom_call.1} parent=1 // pred_check_branch
      %53 = sbr.rel (0) target = $region21
    $region20: #{tpu_custom_call.1} parent=1 // pred_region
      %54 = dma.done [#allocation8], 1280
    $region21: #{tpu_custom_call.1} parent=1 // pred_fallthru
      _
    // Predicated region
    $region22: #{tpu_custom_call.1} parent=1 // pred_check
      _
    $region23: #{tpu_custom_call.1} parent=1 // pred_check_branch
      %56 = sbr.rel (0) target = $region25
    $region24: #{tpu_custom_call.1} parent=1 // pred_region
      %57 = dma.done [#allocation8], 4096
    $region25: #{tpu_custom_call.1} parent=1 // pred_fallthru
      _
    %v59 = vld [vmem:[#allocation4] sm:$0xf]
    %v60 = vld [vmem:[#allocation4 + $0x4] sm:$0xf]
    %v61 = vld [vmem:[#allocation4 + $0x8] sm:$0xf]
    %v62 = vld [vmem:[#allocation4 + $0xc] sm:$0xf]
    %v63 = vld [vmem:[#allocation4 + $0x10] sm:$0xf]
    %v64 = vld [vmem:[#allocation4 + $0x14] sm:$0xf]
    %v65 = vld [vmem:[#allocation4 + $0x18] sm:$0xf]
    %v66 = vld [vmem:[#allocation4 + $0x1c] sm:$0xf]
    %v67 = vld [vmem:[#allocation7] sm:$0xff]
    %v68 = vld [vmem:[#allocation7 + $0x8] sm:$0xff]
    %v69 = vld [vmem:[#allocation7 + $0x10] sm:$0xff]
    %v70 = vld [vmem:[#allocation7 + $0x18] sm:$0xff]
    %v71 = vld [vmem:[#allocation7 + $0x20] sm:$0xff]
    %v72 = vld [vmem:[#allocation7 + $0x28] sm:$0xff]
    %v73 = vld [vmem:[#allocation7 + $0x30] sm:$0xff]
    %v74 = vld [vmem:[#allocation7 + $0x38] sm:$0xff]
    %v75 = vld [vmem:[#allocation7 + $0x40] sm:$0xff]
    %v76 = vld [vmem:[#allocation7 + $0x48] sm:$0xff]
    %v85 = vunpack.c.l.b16 %v59
    %v86 = vunpack.c.l.b16 %v60
    %v87 = vunpack.c.l.b16 %v61
    %v88 = vunpack.c.l.b16 %v62
    %v89 = vunpack.c.l.b16 %v63
    %v90 = vunpack.c.l.b16 %v64
    %v91 = vunpack.c.l.b16 %v65
    %v92 = vunpack.c.l.b16 %v66
    %v93 = vpack.c.b16 %v86, %v85
    %v94 = vpack.c.b16 %v88, %v87
    %v95 = vpack.c.b16 %v90, %v89
    %v96 = vpack.c.b16 %v92, %v91
    %v107 = vunpack.c.l.b16 %v67
    %v108 = vunpack.c.h.b16 %v67
    %v109 = vunpack.c.l.b16 %v68
    %v110 = vunpack.c.h.b16 %v68
    %v111 = vunpack.c.l.b16 %v69
    %v112 = vunpack.c.h.b16 %v69
    %v113 = vunpack.c.l.b16 %v70
    %v114 = vunpack.c.h.b16 %v70
    %v115 = vunpack.c.l.b16 %v71
    %v116 = vunpack.c.h.b16 %v71
    %v117 = vunpack.c.l.b16 %v72
    %v118 = vunpack.c.h.b16 %v72
    %v119 = vunpack.c.l.b16 %v73
    %v120 = vunpack.c.h.b16 %v73
    %v121 = vunpack.c.l.b16 %v74
    %v122 = vunpack.c.h.b16 %v74
    %v123 = vunpack.c.l.b16 %v75
    %v124 = vunpack.c.h.b16 %v75
    %v125 = vunpack.c.l.b16 %v76
    %v126 = vunpack.c.h.b16 %v76
    %v127 = vpack.c.b16 %v109, %v107
    %v128 = vpack.c.b16 %v110, %v108
    %v129 = vpack.c.b16 %v113, %v111
    %v130 = vpack.c.b16 %v114, %v112
    %v131 = vpack.c.b16 %v117, %v115
    %v132 = vpack.c.b16 %v118, %v116
    %v133 = vpack.c.b16 %v121, %v119
    %v134 = vpack.c.b16 %v122, %v120
    %v135 = vpack.c.b16 %v125, %v123
    %v136 = vpack.c.b16 %v126, %v124
    %vm147 = vcmask 654336
    %v149 = vsel %vm147, %v93, 0
    %v152 = vsel %vm147, %v94, 0
    %v155 = vsel %vm147, %v95, 0
    %v158 = vsel %vm147, %v96, 0
    %160 = vmatprep.subr.bf16.mxu0 0
    %161 = vmatpush1.bf16.msra.mxu0 0
    %162 = vmatprep.subr.bf16.mxu0 0
    %163 = vmatpush1.bf16.msra.mxu0 0
    %164 = vmatprep.subr.bf16.mxu0 0
    %165 = vmatpush1.bf16.msra.mxu0 0
    %166 = vmatprep.subr.bf16.mxu0 %v136
    %167 = vmatpush1.bf16.msra.mxu0 %v135
    %168 = vmatprep.subr.bf16.mxu0 %v134
    %169 = vmatpush1.bf16.msra.mxu0 %v133
    %170 = vmatprep.subr.bf16.mxu0 %v132
    %171 = vmatpush1.bf16.msra.mxu0 %v131
    %172 = vmatprep.subr.bf16.mxu0 %v130
    %173 = vmatpush1.bf16.msra.mxu0 %v129
    %174 = vmatprep.subr.bf16.mxu0 %v128
    %175 = vmatpush1.bf16.msra.mxu0 %v127
    %176 = vmatprep.subr.bf16.mxu0 0
    %177 = vmatpush2.bf16.msra.mxu0 0
    %178 = vmatprep.subr.bf16.mxu0 0
    %179 = vmatpush2.bf16.msra.mxu0 0
    %180 = vmatprep.subr.bf16.mxu0 0
    %181 = vmatpush2.bf16.msra.mxu0 0
    %182 = vmatprep.subr.bf16.mxu0 0
    %183 = vmatpush2.bf16.msra.mxu0 0
    %184 = vmatprep.subr.bf16.mxu0 0
    %185 = vmatpush2.bf16.msra.mxu0 0
    %186 = vmatprep.subr.bf16.mxu0 0
    %187 = vmatpush2.bf16.msra.mxu0 0
    %188 = vmatprep.subr.bf16.mxu0 0
    %189 = vmatpush2.bf16.msra.mxu0 0
    %190 = vmatprep.subr.bf16.mxu0 0
    %191 = vmatpush2.bf16.msra.mxu0 0
    %192 = vmatprep.mubr.bf16.mxu0 0
    %193 = vmatmul.mubr.bf16.gmra.mxu0 %v149
    %v194 = vpop.f32.mrf.mxu0
    %v195 = vadd.f32 0.0, %v194
    %v196 = vpop.f32.mrf.mxu0
    %v197 = vadd.f32 0.0, %v196
    %v198 = vpop.f32.mrf.mxu0
    %v199 = vadd.f32 0.0, %v198
    %v200 = vpop.f32.mrf.mxu0
    %v201 = vadd.f32 0.0, %v200
    %202 = vmatprep.mubr.bf16.mxu0 0
    %203 = vmatmul.mubr.bf16.gmra.mxu0 %v152
    %v204 = vpop.f32.mrf.mxu0
    %v205 = vadd.f32 0.0, %v204
    %v206 = vpop.f32.mrf.mxu0
    %v207 = vadd.f32 0.0, %v206
    %v208 = vpop.f32.mrf.mxu0
    %v209 = vadd.f32 0.0, %v208
    %v210 = vpop.f32.mrf.mxu0
    %v211 = vadd.f32 0.0, %v210
    %212 = vmatprep.mubr.bf16.mxu0 0
    %213 = vmatmul.mubr.bf16.gmra.mxu0 %v155
    %v214 = vpop.f32.mrf.mxu0
    %v215 = vadd.f32 0.0, %v214
    %v216 = vpop.f32.mrf.mxu0
    %v217 = vadd.f32 0.0, %v216
    %v218 = vpop.f32.mrf.mxu0
    %v219 = vadd.f32 0.0, %v218
    %v220 = vpop.f32.mrf.mxu0
    %v221 = vadd.f32 0.0, %v220
    %222 = vmatprep.mubr.bf16.mxu0 0
    %223 = vmatmul.mubr.bf16.gmra.mxu0 %v158
    %v224 = vpop.f32.mrf.mxu0
    %v225 = vadd.f32 0.0, %v224
    %v226 = vpop.f32.mrf.mxu0
    %v227 = vadd.f32 0.0, %v226
    %v228 = vpop.f32.mrf.mxu0
    %v229 = vadd.f32 0.0, %v228
    %v230 = vpop.f32.mrf.mxu0
    %v231 = vadd.f32 0.0, %v230
    %232 = vdwg.mxu0
    %v233 = vpack.c.bf16 %v199, %v195
    %v234 = vpack.c.bf16 %v201, %v197
    %v235 = vpack.c.bf16 %v209, %v205
    %v236 = vpack.c.bf16 %v211, %v207
    %v237 = vpack.c.bf16 %v219, %v215
    %v238 = vpack.c.bf16 %v221, %v217
    %v239 = vpack.c.bf16 %v229, %v225
    %v240 = vpack.c.bf16 %v231, %v227
    %v241 = vmax.bf16 %v233, 0
    %v242 = vmax.bf16 %v234, 0
    %v243 = vmax.bf16 %v235, 0
    %v244 = vmax.bf16 %v236, 0
    %v245 = vmax.bf16 %v237, 0
    %v246 = vmax.bf16 %v238, 0
    %v247 = vmax.bf16 %v239, 0
    %v248 = vmax.bf16 %v240, 0
    %v249 = vld [vmem:[#allocation9] sm:$0xff]
    %v250 = vld [vmem:[#allocation9 + $0x8] sm:$0xff]
    %v251 = vld [vmem:[#allocation9 + $0x10] sm:$0xff]
    %v252 = vld [vmem:[#allocation9 + $0x18] sm:$0xff]
    %v253 = vld [vmem:[#allocation9 + $0x20] sm:$0xff]
    %v254 = vld [vmem:[#allocation9 + $0x28] sm:$0xff]
    %v255 = vld [vmem:[#allocation9 + $0x30] sm:$0xff]
    %v256 = vld [vmem:[#allocation9 + $0x38] sm:$0xff]
    %v257 = vld [vmem:[#allocation9 + $0x40] sm:$0xff]
    %v258 = vld [vmem:[#allocation9 + $0x48] sm:$0xff]
    %v259 = vld [vmem:[#allocation9 + $0x50] sm:$0xff]
    %v260 = vld [vmem:[#allocation9 + $0x58] sm:$0xff]
    %v261 = vld [vmem:[#allocation9 + $0x60] sm:$0xff]
    %v262 = vld [vmem:[#allocation9 + $0x68] sm:$0xff]
    %v263 = vld [vmem:[#allocation9 + $0x70] sm:$0xff]
    %v264 = vld [vmem:[#allocation9 + $0x78] sm:$0xff]
    %v265 = vld [vmem:[#allocation9 + $0x80] sm:$0xff]
    %v266 = vld [vmem:[#allocation9 + $0x88] sm:$0xff]
    %v267 = vld [vmem:[#allocation9 + $0x90] sm:$0xff]
    %v268 = vld [vmem:[#allocation9 + $0x98] sm:$0xff]
    %v269 = vld [vmem:[#allocation9 + $0xa0] sm:$0xff]
    %v270 = vld [vmem:[#allocation9 + $0xa8] sm:$0xff]
    %v271 = vld [vmem:[#allocation9 + $0xb0] sm:$0xff]
    %v272 = vld [vmem:[#allocation9 + $0xb8] sm:$0xff]
    %v273 = vld [vmem:[#allocation9 + $0xc0] sm:$0xff]
    %v274 = vld [vmem:[#allocation9 + $0xc8] sm:$0xff]
    %v275 = vld [vmem:[#allocation9 + $0xd0] sm:$0xff]
    %v276 = vld [vmem:[#allocation9 + $0xd8] sm:$0xff]
    %v277 = vld [vmem:[#allocation9 + $0xe0] sm:$0xff]
    %v278 = vld [vmem:[#allocation9 + $0xe8] sm:$0xff]
    %v279 = vld [vmem:[#allocation9 + $0xf0] sm:$0xff]
    %v280 = vld [vmem:[#allocation9 + $0xf8] sm:$0xff]
    %v313 = vunpack.c.l.b16 %v249
    %v314 = vunpack.c.h.b16 %v249
    %v315 = vunpack.c.l.b16 %v250
    %v316 = vunpack.c.h.b16 %v250
    %v317 = vunpack.c.l.b16 %v251
    %v318 = vunpack.c.h.b16 %v251
    %v319 = vunpack.c.l.b16 %v252
    %v320 = vunpack.c.h.b16 %v252
    %v321 = vunpack.c.l.b16 %v253
    %v322 = vunpack.c.h.b16 %v253
    %v323 = vunpack.c.l.b16 %v254
    %v324 = vunpack.c.h.b16 %v254
    %v325 = vunpack.c.l.b16 %v255
    %v326 = vunpack.c.h.b16 %v255
    %v327 = vunpack.c.l.b16 %v256
    %v328 = vunpack.c.h.b16 %v256
    %v329 = vunpack.c.l.b16 %v257
    %v330 = vunpack.c.h.b16 %v257
    %v331 = vunpack.c.l.b16 %v258
    %v332 = vunpack.c.h.b16 %v258
    %v333 = vunpack.c.l.b16 %v259
    %v334 = vunpack.c.h.b16 %v259
    %v335 = vunpack.c.l.b16 %v260
    %v336 = vunpack.c.h.b16 %v260
    %v337 = vunpack.c.l.b16 %v261
    %v338 = vunpack.c.h.b16 %v261
    %v339 = vunpack.c.l.b16 %v262
    %v340 = vunpack.c.h.b16 %v262
    %v341 = vunpack.c.l.b16 %v263
    %v342 = vunpack.c.h.b16 %v263
    %v343 = vunpack.c.l.b16 %v264
    %v344 = vunpack.c.h.b16 %v264
    %v345 = vunpack.c.l.b16 %v265
    %v346 = vunpack.c.h.b16 %v265
    %v347 = vunpack.c.l.b16 %v266
    %v348 = vunpack.c.h.b16 %v266
    %v349 = vunpack.c.l.b16 %v267
    %v350 = vunpack.c.h.b16 %v267
    %v351 = vunpack.c.l.b16 %v268
    %v352 = vunpack.c.h.b16 %v268
    %v353 = vunpack.c.l.b16 %v269
    %v354 = vunpack.c.h.b16 %v269
    %v355 = vunpack.c.l.b16 %v270
    %v356 = vunpack.c.h.b16 %v270
    %v357 = vunpack.c.l.b16 %v271
    %v358 = vunpack.c.h.b16 %v271
    %v359 = vunpack.c.l.b16 %v272
    %v360 = vunpack.c.h.b16 %v272
    %v361 = vunpack.c.l.b16 %v273
    %v362 = vunpack.c.h.b16 %v273
    %v363 = vunpack.c.l.b16 %v274
    %v364 = vunpack.c.h.b16 %v274
    %v365 = vunpack.c.l.b16 %v275
    %v366 = vunpack.c.h.b16 %v275
    %v367 = vunpack.c.l.b16 %v276
    %v368 = vunpack.c.h.b16 %v276
    %v369 = vunpack.c.l.b16 %v277
    %v370 = vunpack.c.h.b16 %v277
    %v371 = vunpack.c.l.b16 %v278
    %v372 = vunpack.c.h.b16 %v278
    %v373 = vunpack.c.l.b16 %v279
    %v374 = vunpack.c.h.b16 %v279
    %v375 = vunpack.c.l.b16 %v280
    %v376 = vunpack.c.h.b16 %v280
    %v377 = vpack.c.b16 %v315, %v313
    %v378 = vpack.c.b16 %v316, %v314
    %v379 = vpack.c.b16 %v319, %v317
    %v380 = vpack.c.b16 %v320, %v318
    %v381 = vpack.c.b16 %v323, %v321
    %v382 = vpack.c.b16 %v324, %v322
    %v383 = vpack.c.b16 %v327, %v325
    %v384 = vpack.c.b16 %v328, %v326
    %v385 = vpack.c.b16 %v331, %v329
    %v386 = vpack.c.b16 %v332, %v330
    %v387 = vpack.c.b16 %v335, %v333
    %v388 = vpack.c.b16 %v336, %v334
    %v389 = vpack.c.b16 %v339, %v337
    %v390 = vpack.c.b16 %v340, %v338
    %v391 = vpack.c.b16 %v343, %v341
    %v392 = vpack.c.b16 %v344, %v342
    %v393 = vpack.c.b16 %v347, %v345
    %v394 = vpack.c.b16 %v348, %v346
    %v395 = vpack.c.b16 %v351, %v349
    %v396 = vpack.c.b16 %v352, %v350
    %v397 = vpack.c.b16 %v355, %v353
    %v398 = vpack.c.b16 %v356, %v354
    %v399 = vpack.c.b16 %v359, %v357
    %v400 = vpack.c.b16 %v360, %v358
    %v401 = vpack.c.b16 %v363, %v361
    %v402 = vpack.c.b16 %v364, %v362
    %v403 = vpack.c.b16 %v367, %v365
    %v404 = vpack.c.b16 %v368, %v366
    %v405 = vpack.c.b16 %v371, %v369
    %v406 = vpack.c.b16 %v372, %v370
    %v407 = vpack.c.b16 %v375, %v373
    %v408 = vpack.c.b16 %v376, %v374
    %441 = vmatprep.subr.bf16.mxu0 %v392
    %442 = vmatpush1.bf16.msra.mxu0 %v391
    %443 = vmatprep.subr.bf16.mxu0 %v390
    %444 = vmatpush1.bf16.msra.mxu0 %v389
    %445 = vmatprep.subr.bf16.mxu0 %v388
    %446 = vmatpush1.bf16.msra.mxu0 %v387
    %447 = vmatprep.subr.bf16.mxu0 %v386
    %448 = vmatpush1.bf16.msra.mxu0 %v385
    %449 = vmatprep.subr.bf16.mxu0 %v384
    %450 = vmatpush1.bf16.msra.mxu0 %v383
    %451 = vmatprep.subr.bf16.mxu0 %v382
    %452 = vmatpush1.bf16.msra.mxu0 %v381
    %453 = vmatprep.subr.bf16.mxu0 %v380
    %454 = vmatpush1.bf16.msra.mxu0 %v379
    %455 = vmatprep.subr.bf16.mxu0 %v378
    %456 = vmatpush1.bf16.msra.mxu0 %v377
    %457 = vmatprep.subr.bf16.mxu0 %v408
    %458 = vmatpush2.bf16.msra.mxu0 %v407
    %459 = vmatprep.subr.bf16.mxu0 %v406
    %460 = vmatpush2.bf16.msra.mxu0 %v405
    %461 = vmatprep.subr.bf16.mxu0 %v404
    %462 = vmatpush2.bf16.msra.mxu0 %v403
    %463 = vmatprep.subr.bf16.mxu0 %v402
    %464 = vmatpush2.bf16.msra.mxu0 %v401
    %465 = vmatprep.subr.bf16.mxu0 %v400
    %466 = vmatpush2.bf16.msra.mxu0 %v399
    %467 = vmatprep.subr.bf16.mxu0 %v398
    %468 = vmatpush2.bf16.msra.mxu0 %v397
    %469 = vmatprep.subr.bf16.mxu0 %v396
    %470 = vmatpush2.bf16.msra.mxu0 %v395
    %471 = vmatprep.subr.bf16.mxu0 %v394
    %472 = vmatpush2.bf16.msra.mxu0 %v393
    %473 = vmatprep.mubr.bf16.mxu0 %v242
    %474 = vmatmul.mubr.bf16.gmra.mxu0 %v241
    %v475 = vpop.f32.mrf.mxu0
    %v476 = vadd.f32 0.0, %v475
    %v477 = vpop.f32.mrf.mxu0
    %v478 = vadd.f32 0.0, %v477
    %v479 = vpop.f32.mrf.mxu0
    %v480 = vadd.f32 0.0, %v479
    %v481 = vpop.f32.mrf.mxu0
    %v482 = vadd.f32 0.0, %v481
    %483 = vmatprep.mubr.bf16.mxu0 %v244
    %484 = vmatmul.mubr.bf16.gmra.mxu0 %v243
    %v485 = vpop.f32.mrf.mxu0
    %v486 = vadd.f32 0.0, %v485
    %v487 = vpop.f32.mrf.mxu0
    %v488 = vadd.f32 0.0, %v487
    %v489 = vpop.f32.mrf.mxu0
    %v490 = vadd.f32 0.0, %v489
    %v491 = vpop.f32.mrf.mxu0
    %v492 = vadd.f32 0.0, %v491
    %493 = vmatprep.mubr.bf16.mxu0 %v246
    %494 = vmatmul.mubr.bf16.gmra.mxu0 %v245
    %v495 = vpop.f32.mrf.mxu0
    %v496 = vadd.f32 0.0, %v495
    %v497 = vpop.f32.mrf.mxu0
    %v498 = vadd.f32 0.0, %v497
    %v499 = vpop.f32.mrf.mxu0
    %v500 = vadd.f32 0.0, %v499
    %v501 = vpop.f32.mrf.mxu0
    %v502 = vadd.f32 0.0, %v501
    %503 = vmatprep.mubr.bf16.mxu0 %v248
    %504 = vmatmul.mubr.bf16.gmra.mxu0 %v247
    %v505 = vpop.f32.mrf.mxu0
    %v506 = vadd.f32 0.0, %v505
    %v507 = vpop.f32.mrf.mxu0
    %v508 = vadd.f32 0.0, %v507
    %v509 = vpop.f32.mrf.mxu0
    %v510 = vadd.f32 0.0, %v509
    %v511 = vpop.f32.mrf.mxu0
    %v512 = vadd.f32 0.0, %v511
    %513 = vdwg.mxu0
    %v514 = vpack.c.bf16 %v480, %v476
    %v515 = vpack.c.bf16 %v482, %v478
    %v516 = vpack.c.bf16 %v490, %v486
    %v517 = vpack.c.bf16 %v492, %v488
    %v518 = vpack.c.bf16 %v500, %v496
    %v519 = vpack.c.bf16 %v502, %v498
    %v520 = vpack.c.bf16 %v510, %v506
    %v521 = vpack.c.bf16 %v512, %v508
    %v522 = vmax.bf16 %v514, 0
    %v523 = vmax.bf16 %v515, 0
    %v524 = vmax.bf16 %v516, 0
    %v525 = vmax.bf16 %v517, 0
    %v526 = vmax.bf16 %v518, 0
    %v527 = vmax.bf16 %v519, 0
    %v528 = vmax.bf16 %v520, 0
    %v529 = vmax.bf16 %v521, 0
    %v538 = vunpack.c.l.b16 %v522
    %v539 = vunpack.c.l.b16 %v523
    %v540 = vunpack.c.h.b16 %v522
    %v541 = vunpack.c.h.b16 %v523
    %v542 = vunpack.c.l.b16 %v524
    %v543 = vunpack.c.l.b16 %v525
    %v544 = vunpack.c.h.b16 %v524
    %v545 = vunpack.c.h.b16 %v525
    %v546 = vunpack.c.l.b16 %v526
    %v547 = vunpack.c.l.b16 %v527
    %v548 = vunpack.c.h.b16 %v526
    %v549 = vunpack.c.h.b16 %v527
    %v550 = vunpack.c.l.b16 %v528
    %v551 = vunpack.c.l.b16 %v529
    %v552 = vunpack.c.h.b16 %v528
    %v553 = vunpack.c.h.b16 %v529
    %v554 = vpack.c.b16 %v539, %v538
    %v555 = vpack.c.b16 %v541, %v540
    %v556 = vpack.c.b16 %v543, %v542
    %v557 = vpack.c.b16 %v545, %v544
    %v558 = vpack.c.b16 %v547, %v546
    %v559 = vpack.c.b16 %v549, %v548
    %v560 = vpack.c.b16 %v551, %v550
    %v561 = vpack.c.b16 %v553, %v552
    %570 = vst [vmem:[#allocation10] sm:$0xff] %v554
    %571 = vst [vmem:[#allocation10 + $0x8] sm:$0xff] %v555
    %572 = vst [vmem:[#allocation10 + $0x10] sm:$0xff] %v556
    %573 = vst [vmem:[#allocation10 + $0x18] sm:$0xff] %v557
    %574 = vst [vmem:[#allocation10 + $0x20] sm:$0xff] %v558
    %575 = vst [vmem:[#allocation10 + $0x28] sm:$0xff] %v559
    %576 = vst [vmem:[#allocation10 + $0x30] sm:$0xff] %v560
    %577 = vst [vmem:[#allocation10 + $0x38] sm:$0xff] %v561
    // Predicated region
    $region26: #{tpu_custom_call.1} parent=1 // pred_check
      _
    $region27: #{tpu_custom_call.1} parent=1 // pred_check_branch
      %579 = sbr.rel (0) target = $region29
    $region28: #{tpu_custom_call.1} parent=1 // pred_region
      %s581 = ssub.s32 1024, 1024
      %582 = vsyncadd [#allocation6], %s581
      %s583 = sshll.u32 [#allocation10], 4
      %s584 = int_to_ptr.vmem [resolvable:$true] %s583
      %589 = dma.vmem_to_hbm [thread:$0]  %s584, 1024, %s4, [#allocation6], 128, 128, 8
    $region29: #{tpu_custom_call.1} parent=1 // pred_fallthru
      _
    // Predicated region
    $region30: #{tpu_custom_call.1} parent=1 // pred_check
      _
    $region31: #{tpu_custom_call.1} parent=1 // pred_check_branch
      %591 = sbr.rel (0) target = $region33
    $region32: #{tpu_custom_call.1} parent=1 // pred_region
      %592 = dma.done [#allocation6], 1024
    $region33: #{tpu_custom_call.1} parent=1 // pred_fallthru
      _
    %593 = vsyncpa [#allocation5], 1
    %594 = vsyncpa [#allocation8], 1
    %595 = vsyncpa [#allocation6], 1

</llo_original>
